<compile_context>
chip_gen: v7x
topology: tpu7x:2x2x1
jax: 0.10.0
libtpu: 0.0.40
codegen_flags: <defaults>
</compile_context>

<pallas_src>
import functools
import math

import jax
import jax.numpy as jnp
from jax.experimental import pallas as pl
from jax.experimental.pallas import tpu as pltpu


# ------------------------------------------------------------------ kernel ---
def pe_add_kernel(x_ref, pe_ref, out_ref, *, batch: int):
    """x_ref / out_ref: (block_s, B*D); pe_ref: (block_s, D)."""
    pe = pe_ref[...]                                   # (block_s, D)
    if batch > 1:
        # Broadcast pe over the batch dim, which is folded into the lane axis
        # as [b0 | b1 | ...] blocks of width D each (lane-aligned concat).
        pe = jnp.concatenate([pe] * batch, axis=-1)    # (block_s, B*D)
    out_ref[...] = x_ref[...] + pe


# ----------------------------------------------------------------- wrapper ---
def make_positional_encoding_table(d_model: int, max_len: int = 5000):
    """Matches the torch buffer: pe[pos, 2i] = sin(pos*w_i), pe[pos, 2i+1] = cos."""
    position = jnp.arange(max_len, dtype=jnp.float32)[:, None]            # (L, 1)
    div_term = jnp.exp(
        jnp.arange(0, d_model, 2, dtype=jnp.float32)
        * (-math.log(10000.0) / d_model)
    )                                                                      # (D/2,)
    angles = position * div_term                                           # (L, D/2)
    pe = jnp.zeros((max_len, d_model), jnp.float32)
    pe = pe.at[:, 0::2].set(jnp.sin(angles))
    pe = pe.at[:, 1::2].set(jnp.cos(angles))
    return pe


def positional_encoding(x, pe_table, *, block_s=None):
    """x: (S, B, D) float32; pe_table: (max_len, D).  Returns x + pe[:S]."""
    S, B, D = x.shape
    pe_s = pe_table[:S]                       # self.pe[:x.size(0)] -> (S, D)
    x2 = x.reshape(S, B * D)                  # lane-dense flatten (free reshape)

    if block_s is None:
        # Single block for small S; otherwise tile in multiples of 8 rows.
        block_s = S if S <= 512 else 512
    if block_s != S and block_s % 8 != 0:
        raise ValueError("block_s must be a multiple of 8 when tiling the seq axis")
    grid = (pl.cdiv(S, block_s),)

    out2 = pl.pallas_call(
        functools.partial(pe_add_kernel, batch=B),
        out_shape=jax.ShapeDtypeStruct((S, B * D), x.dtype),
        grid=grid,
        in_specs=[
            pl.BlockSpec((block_s, B * D), lambda i: (i, 0)),   # x slab
            pl.BlockSpec((block_s, D), lambda i: (i, 0)),       # pe rows
        ],
        out_specs=pl.BlockSpec((block_s, B * D), lambda i: (i, 0)),
        compiler_params=pltpu.CompilerParams(
            dimension_semantics=("parallel",),    # seq tiles are independent
        ),
    )(x2, pe_s)
    return out2.reshape(S, B, D)


# ---------------------------------------------------------------- main -------
if __name__ == "__main__":
    # Module hyper-params (small, TPU-friendly): even d_model, seq-first layout.
    d_model = 128
    max_len = 128           # constructor arg; only needs to be >= seq_len
    S, B = 16, 4

    key = jax.random.PRNGKey(0)
    x = jax.random.normal(key, (S, B, d_model), jnp.float32)

    pe_table = make_positional_encoding_table(d_model, max_len)

    # block_s=8 -> 2 "parallel" grid steps (keeps both v7x TensorCores busy);
    # on v5e/v6e a single collapsed block (block_s=None -> block_s=S) is
    # equivalent at this size.
    out = positional_encoding(x, pe_table, block_s=8)
    out = jax.block_until_ready(out)

    # Pure-JAX reference of the torch forward (eval mode: dropout is identity).
    ref = x + pe_table[:S][:, None, :]
    assert out.shape == (S, B, d_model)
    assert jnp.allclose(out, ref, atol=1e-6, rtol=1e-6)

    print("KERNEL_OK")
</pallas_src>

<mosaic_0001>
module attributes {stable_mosaic.version = 11 : i64} {
  func.func @pe_add_kernel(%arg0: i32, %arg1: memref<8x512xf32, #tpu.memory_space<vmem>>, %arg2: memref<8x128xf32, #tpu.memory_space<vmem>>, %arg3: memref<8x512xf32, #tpu.memory_space<vmem>>) attributes {dimension_semantics = [#tpu.dimension_semantics<parallel>], iteration_bounds = array<i64: 2>, scalar_prefetch = 0 : i64, scratch_operands = 0 : i64, tpu.core_type = #tpu.core_type<tc>, window_params = [{transform_indices = @transform_0, window_bounds = array<i64: 8, 512>}, {transform_indices = @transform_1, window_bounds = array<i64: 8, 128>}, {transform_indices = @transform_2, window_bounds = array<i64: 8, 512>}]} {
    %c0 = arith.constant 0 : index
    %c0_0 = arith.constant 0 : index
    %0 = vector.load %arg2[%c0, %c0_0] : memref<8x128xf32, #tpu.memory_space<vmem>>, vector<8x128xf32>
    %1 = tpu.concatenate %0, %0, %0, %0 in 1 : vector<8x128xf32>, vector<8x128xf32>, vector<8x128xf32>, vector<8x128xf32> -> vector<8x512xf32>
    %c0_1 = arith.constant 0 : index
    %c0_2 = arith.constant 0 : index
    %2 = vector.load %arg1[%c0_1, %c0_2] : memref<8x512xf32, #tpu.memory_space<vmem>>, vector<8x512xf32>
    %3 = arith.addf %2, %1 : vector<8x512xf32>
    %c0_3 = arith.constant 0 : index
    %c0_4 = arith.constant 0 : index
    %4 = vector.load %arg3[%c0_3, %c0_4] : memref<8x512xf32, #tpu.memory_space<vmem>>, vector<8x512xf32>
    tpu.vector_store %arg3[%c0_3, %c0_4], %3 {strides = array<i32>} : memref<8x512xf32, #tpu.memory_space<vmem>>, vector<8x512xf32>,
    return
  }
  func.func @transform_0(%arg0: i32) -> (i32, i32) {
    %c0_i32 = arith.constant 0 : i32
    %c0_i32_0 = arith.constant 0 : i32
    return %arg0, %c0_i32 : i32, i32
  }
  func.func @transform_1(%arg0: i32) -> (i32, i32) {
    %c0_i32 = arith.constant 0 : i32
    %c0_i32_0 = arith.constant 0 : i32
    return %arg0, %c0_i32 : i32, i32
  }
  func.func @transform_2(%arg0: i32) -> (i32, i32) {
    %c0_i32 = arith.constant 0 : i32
    %c0_i32_0 = arith.constant 0 : i32
    return %arg0, %c0_i32 : i32, i32
  }
}

</mosaic_0001>

<llo_original>
// kernel: tpu_custom_call.1
$region0: #{tpu_custom_call.1}
  #allocation0 [shape = 'u32[]', space=smem, size = 0x4, offset = 0x4, fixed_abs, tag = 'smem constant byte address 0x4 - core index']
  #allocation1 [shape = 'u32[144,128]{1,0:T(1,128)}', space=vmem, size = 0x12000, scoped, tag = 'internal scratch']
  %s0 = inlined_call_operand.hbm [shape: f32[16,512], index: 0, kind: input, shape index: {}]
  %s1 = inlined_call_operand.hbm [shape: f32[16,128], index: 1, kind: input, shape index: {}]
  %s2 = inlined_call_operand.hbm [shape: f32[16,512], index: 2, kind: output, shape index: {}]
  %s3 = sld [smem:[#allocation0]]
  $region49: #{tpu_custom_call.1} parent=0
    _
  %s5 = ssub.s32 1, %s3
  %s6 = scalar_select 0, %s5, %s3
  $region1: #{tpu_custom_call.1} parent=0
    #allocation2 [shape = 'u8[32768]{0}', space=vmem, size = 0x8000, scoped, tag = 'input window, operand 0']
    #allocation3 [shape = 's32[2]{0}', space=sflag, size = 0x8, scoped, tag = 'scoped memory for tpu_custom_call.1']
    #allocation4 [shape = 's32[2]{0}', space=sflag, size = 0x8, scoped, tag = 'scoped memory for tpu_custom_call.1']
    #allocation5 [shape = 'u8[8192]{0}', space=vmem, size = 0x2000, scoped, tag = 'input window, operand 1']
    #allocation6 [shape = 's32[2]{0}', space=sflag, size = 0x8, scoped, tag = 'scoped memory for tpu_custom_call.1']
    #allocation7 [shape = 'u8[32768]{0}', space=vmem, size = 0x8000, scoped, tag = 'output window, operand 0']
    %7 = vsyncpa [#allocation3], 0
    %s8 = scalar_lea.sflag [#allocation3], 1
    %9 = vsyncpa %s8, 0
    %10 = vsyncpa [#allocation6], 0
    %s11 = scalar_lea.sflag [#allocation6], 1
    %12 = vsyncpa %s11, 0
    %13 = vsyncpa [#allocation4], 0
    %s14 = scalar_lea.sflag [#allocation4], 1
    %15 = vsyncpa %s14, 0
    loop: start=0, step=1, limit=4
    $region2: #{tpu_custom_call.1} parent=1 // loop_pre_header
      _
    $region3: #{tpu_custom_call.1} parent=1 // loop_header
      %s17 = sphi 0, %s21
      %p18 = scmp.ge.s32.totalorder %s17, 4
      %s27 = sphi 0, %s29
      %s30 = sphi 0, %s27
      %s31 = sphi 0, %s30
      %s47 = sphi 0, %s31
      %s53 = sphi 0, %s55
      %s56 = sphi 0, %s53
      %s57 = sphi 0, %s56
      %s73 = sphi 0, %s57
      %s79 = sphi 0, %s81
      %s82 = sphi 0, %s79
      %s83 = sphi 0, %s82
      %s99 = sphi 0, %s83
    $region4: #{tpu_custom_call.1} parent=1 // loop_header_branch
      %20 = sbr.rel (%p18) target = $region8
    $region5: #{tpu_custom_call.1} parent=1 // loop_body
      %s22 = ssub.s32 %s17, 1
      %s23 = ssub.s32 %s17, 2
      %s24 = sadd.s32 %s17, 1
      %s25 = ssub.s32 %s17, %s24
      %p26 = scmp.eq.s32.totalorder %s25, 0
      %s28 = sadd.s32 %s27, 1
      %s29 = scalar_select %p26, %s27, %s28
      %p32 = pneg %p26
      %p33 = scmp.eq.s32.totalorder %s17, 1
      %p34 = por %p32, %p33
      %p35 = scmp.ne.s32.totalorder %s27, %s30
      %p36 = scmp.eq.s32.totalorder %s17, 0
      %p37 = por %p35, %p36
      %p38 = scmp.ne.s32.totalorder %s27, %s30
      %p39 = scmp.eq.s32.totalorder %s22, 1
      %p40 = por %p38, %p39
      %p41 = scmp.ne.s32.totalorder %s30, %s31
      %p42 = scmp.eq.s32.totalorder %s22, 0
      %p43 = por %p41, %p42
      %p44 = scmp.ne.s32.totalorder %s30, %s31
      %p45 = scmp.eq.s32.totalorder %s23, 1
      %p46 = por %p44, %p45
      %p48 = scmp.ne.s32.totalorder %s31, %s47
      %p49 = scmp.eq.s32.totalorder %s23, 0
      %p50 = por %p48, %p49
      %s51 = ssub.s32 %s17, %s24
      %p52 = scmp.eq.s32.totalorder %s51, 0
      %s54 = sadd.s32 %s53, 1
      %s55 = scalar_select %p52, %s53, %s54
      %p58 = pneg %p52
      %p59 = scmp.eq.s32.totalorder %s17, 1
      %p60 = por %p58, %p59
      %p61 = scmp.ne.s32.totalorder %s53, %s56
      %p62 = scmp.eq.s32.totalorder %s17, 0
      %p63 = por %p61, %p62
      %p64 = scmp.ne.s32.totalorder %s53, %s56
      %p65 = scmp.eq.s32.totalorder %s22, 1
      %p66 = por %p64, %p65
      %p67 = scmp.ne.s32.totalorder %s56, %s57
      %p68 = scmp.eq.s32.totalorder %s22, 0
      %p69 = por %p67, %p68
      %p70 = scmp.ne.s32.totalorder %s56, %s57
      %p71 = scmp.eq.s32.totalorder %s23, 1
      %p72 = por %p70, %p71
      %p74 = scmp.ne.s32.totalorder %s57, %s73
      %p75 = scmp.eq.s32.totalorder %s23, 0
      %p76 = por %p74, %p75
      %s77 = ssub.s32 %s17, %s24
      %p78 = scmp.eq.s32.totalorder %s77, 0
      %s80 = sadd.s32 %s79, 1
      %s81 = scalar_select %p78, %s79, %s80
      %p84 = pneg %p78
      %p85 = scmp.eq.s32.totalorder %s17, 1
      %p86 = por %p84, %p85
      %p87 = scmp.ne.s32.totalorder %s79, %s82
      %p88 = scmp.eq.s32.totalorder %s17, 0
      %p89 = por %p87, %p88
      %p90 = scmp.ne.s32.totalorder %s79, %s82
      %p91 = scmp.eq.s32.totalorder %s22, 1
      %p92 = por %p90, %p91
      %p93 = scmp.ne.s32.totalorder %s82, %s83
      %p94 = scmp.eq.s32.totalorder %s22, 0
      %p95 = por %p93, %p94
      %p96 = scmp.ne.s32.totalorder %s82, %s83
      %p97 = scmp.eq.s32.totalorder %s23, 1
      %p98 = por %p96, %p97
      %p100 = scmp.ne.s32.totalorder %s83, %s99
      %p101 = scmp.eq.s32.totalorder %s23, 0
      %p102 = por %p100, %p101
      %p103 = scmp.le.s32.totalorder 1, %s17
      %p104 = scmp.lt.s32.totalorder %s17, 3
      %p105 = pnand %p103, %p104
      %p106 = pneg %p105
      // Predicated region
      $region9: #{tpu_custom_call.1} parent=5 // pred_check
        _
      $region10: #{tpu_custom_call.1} parent=5 // pred_check_branch
        %108 = sbr.rel (%p105) target = $region12
      $region11: #{tpu_custom_call.1} parent=5 // pred_region
        %s109 = ssub.s32 %s17, 1
      $region12: #{tpu_custom_call.1} parent=5 // pred_fallthru
        _
      %p110 = scmp.lt.s32.totalorder %s17, 2
      // Predicated region
      $region13: #{tpu_custom_call.1} parent=5 // pred_check
        %p111 = pneg %p110
      $region14: #{tpu_custom_call.1} parent=5 // pred_check_branch
        %113 = sbr.rel (%p111) target = $region16
      $region15: #{tpu_custom_call.1} parent=5 // pred_region
        // Predicated region
        $region17: #{tpu_custom_call.1} parent=15 // pred_check
          %p114 = pneg %p37
        $region18: #{tpu_custom_call.1} parent=15 // pred_check_branch
          %116 = sbr.rel (%p114) target = $region20
        $region19: #{tpu_custom_call.1} parent=15 // pred_region
          %s117 = sand.u32 %s27, 1
          %s118 = scalar_lea.sflag [#allocation3], %s117
          %s119 = sand.u32 %s27, 1
          %s120 = smul.addr %s119, 32
          %s121 = scalar_lea.vmem [#allocation2], %s120
          %s123 = ssub.s32 512, 512
          %124 = vsyncadd %s118, %s123
          %s125 = smul.addr %s17, 4
          %s126 = smul.addr %s125, 128
          %s127 = scalar_lea.hbm %s0, %s126
          %s129 = sshll.u32 %s121, 4
          %s130 = int_to_ptr.vmem [resolvable:$true] %s129
          %132 = dma.hbm_to_vmem [thread:$0]  %s127, 512, %s130, %s118
        $region20: #{tpu_custom_call.1} parent=15 // pred_fallthru
          _
        // Predicated region
        $region21: #{tpu_custom_call.1} parent=15 // pred_check
          %p133 = pneg %p63
        $region22: #{tpu_custom_call.1} parent=15 // pred_check_branch
          %135 = sbr.rel (%p133) target = $region24
        $region23: #{tpu_custom_call.1} parent=15 // pred_region
          %s136 = sand.u32 %s53, 1
          %s137 = scalar_lea.sflag [#allocation6], %s136
          %s138 = sand.u32 %s53, 1
          %s139 = smul.addr %s138, 8
          %s140 = scalar_lea.vmem [#allocation5], %s139
          %s142 = ssub.s32 128, 128
          %143 = vsyncadd %s137, %s142
          %s144 = smul.addr %s17, 128
          %s145 = scalar_lea.hbm %s1, %s144
          %s147 = sshll.u32 %s140, 4
          %s148 = int_to_ptr.vmem [resolvable:$true] %s147
          %150 = dma.hbm_to_vmem [thread:$0]  %s145, 128, %s148, %s137
        $region24: #{tpu_custom_call.1} parent=15 // pred_fallthru
          _
      $region16: #{tpu_custom_call.1} parent=5 // pred_fallthru
        _
      %p151 = scmp.le.s32.totalorder 1, %s17
      %p152 = scmp.lt.s32.totalorder %s17, 3
      %p153 = pnand %p151, %p152
      %p154 = pneg %p153
      // Predicated region
      $region25: #{tpu_custom_call.1} parent=5 // pred_check
        _
      $region26: #{tpu_custom_call.1} parent=5 // pred_check_branch
        %156 = sbr.rel (%p153) target = $region28
      $region27: #{tpu_custom_call.1} parent=5 // pred_region
        %s157 = ssub.s32 %s17, 1
        %s158 = sand.u32 %s30, 1
        %s159 = scalar_lea.sflag [#allocation3], %s158
        %s160 = sand.u32 %s30, 1
        %s161 = smul.addr %s160, 32
        %s162 = scalar_lea.vmem [#allocation2], %s161
        // Predicated region
        $region29: #{tpu_custom_call.1} parent=27 // pred_check
          %p163 = pneg %p43
        $region30: #{tpu_custom_call.1} parent=27 // pred_check_branch
          %165 = sbr.rel (%p163) target = $region32
        $region31: #{tpu_custom_call.1} parent=27 // pred_region
          %166 = dma.done %s159, 512
        $region32: #{tpu_custom_call.1} parent=27 // pred_fallthru
          _
        %s167 = sand.u32 %s56, 1
        %s168 = scalar_lea.sflag [#allocation6], %s167
        %s169 = sand.u32 %s56, 1
        %s170 = smul.addr %s169, 8
        %s171 = scalar_lea.vmem [#allocation5], %s170
        // Predicated region
        $region33: #{tpu_custom_call.1} parent=27 // pred_check
          %p172 = pneg %p69
        $region34: #{tpu_custom_call.1} parent=27 // pred_check_branch
          %174 = sbr.rel (%p172) target = $region36
        $region35: #{tpu_custom_call.1} parent=27 // pred_region
          %175 = dma.done %s168, 128
        $region36: #{tpu_custom_call.1} parent=27 // pred_fallthru
          _
        %s176 = sand.u32 %s30, 1
        %s177 = scalar_lea.sflag [#allocation3], %s176
        %s178 = sand.u32 %s30, 1
        %s179 = smul.addr %s178, 32
        %s180 = scalar_lea.vmem [#allocation2], %s179
        %p181 = pneg %p43
        %p182 = pneg %p40
        %s183 = sand.u32 %s56, 1
        %s184 = scalar_lea.sflag [#allocation6], %s183
        %s185 = sand.u32 %s56, 1
        %s186 = smul.addr %s185, 8
        %s187 = scalar_lea.vmem [#allocation5], %s186
        %p188 = pneg %p69
        %p189 = pneg %p66
        %p190 = pneg %p95
        %p191 = pneg %p92
        %s192 = sand.u32 %s82, 1
        %s193 = scalar_lea.sflag [#allocation4], %s192
        %s194 = sand.u32 %s82, 1
        %s195 = smul.addr %s194, 32
        %s196 = scalar_lea.vmem [#allocation7], %s195
        %v197 = vld [vmem:[%s171] sm:$0xff]
        %v198 = vld [vmem:[%s162] sm:$0xff]
        %v199 = vld [vmem:[%s162 + $0x8] sm:$0xff]
        %v200 = vld [vmem:[%s162 + $0x10] sm:$0xff]
        %v201 = vld [vmem:[%s162 + $0x18] sm:$0xff]
        %v202 = vadd.f32 %v198, %v197
        %v203 = vadd.f32 %v199, %v197
        %v204 = vadd.f32 %v200, %v197
        %v205 = vadd.f32 %v201, %v197
        %206 = vst [vmem:[%s196] sm:$0xff] %v202
        %207 = vst [vmem:[%s196 + $0x8] sm:$0xff] %v203
        %208 = vst [vmem:[%s196 + $0x10] sm:$0xff] %v204
        %209 = vst [vmem:[%s196 + $0x18] sm:$0xff] %v205
        %s210 = sand.u32 %s82, 1
        %s211 = scalar_lea.sflag [#allocation4], %s210
        %s212 = sand.u32 %s82, 1
        %s213 = smul.addr %s212, 32
        %s214 = scalar_lea.vmem [#allocation7], %s213
        // Predicated region
        $region37: #{tpu_custom_call.1} parent=27 // pred_check
          %p215 = pneg %p92
        $region38: #{tpu_custom_call.1} parent=27 // pred_check_branch
          %217 = sbr.rel (%p215) target = $region40
        $region39: #{tpu_custom_call.1} parent=27 // pred_region
          %s219 = ssub.s32 512, 512
          %220 = vsyncadd %s211, %s219
          %s221 = smul.addr %s22, 4
          %s222 = smul.addr %s221, 128
          %s223 = scalar_lea.hbm %s2, %s222
          %s225 = sshll.u32 %s214, 4
          %s226 = int_to_ptr.vmem [resolvable:$true] %s225
          %228 = dma.vmem_to_hbm [thread:$0]  %s226, 512, %s223, %s211
        $region40: #{tpu_custom_call.1} parent=27 // pred_fallthru
          _
      $region28: #{tpu_custom_call.1} parent=5 // pred_fallthru
        _
      %p229 = scmp.le.s32.totalorder 2, %s17
      // Predicated region
      $region41: #{tpu_custom_call.1} parent=5 // pred_check
        %p230 = pneg %p229
      $region42: #{tpu_custom_call.1} parent=5 // pred_check_branch
        %232 = sbr.rel (%p230) target = $region44
      $region43: #{tpu_custom_call.1} parent=5 // pred_region
        %s233 = ssub.s32 %s17, 2
        // Predicated region
        $region45: #{tpu_custom_call.1} parent=43 // pred_check
          %p234 = pneg %p98
        $region46: #{tpu_custom_call.1} parent=43 // pred_check_branch
          %236 = sbr.rel (%p234) target = $region48
        $region47: #{tpu_custom_call.1} parent=43 // pred_region
          %s237 = sand.u32 %s83, 1
          %s238 = scalar_lea.sflag [#allocation4], %s237
          %s239 = sand.u32 %s83, 1
          %s240 = smul.addr %s239, 32
          %s241 = scalar_lea.vmem [#allocation7], %s240
          %242 = dma.done %s238, 512
        $region48: #{tpu_custom_call.1} parent=43 // pred_fallthru
          _
      $region44: #{tpu_custom_call.1} parent=5 // pred_fallthru
        _
    $region6: #{tpu_custom_call.1} parent=1 // loop_footer
      %s21 = sadd.s32 1, %s17
    $region7: #{tpu_custom_call.1} parent=1 // loop_footer_branch
      %16 = sbr.rel target = $region3
    $region8: #{tpu_custom_call.1} parent=1 // loop_exit
      _
    %243 = vsyncpa [#allocation3], 1
    %s244 = scalar_lea.sflag [#allocation3], 1
    %245 = vsyncpa %s244, 1
    %246 = vsyncpa [#allocation6], 1
    %s247 = scalar_lea.sflag [#allocation6], 1
    %248 = vsyncpa %s247, 1
    %249 = vsyncpa [#allocation4], 1
    %s250 = scalar_lea.sflag [#allocation4], 1
    %251 = vsyncpa %s250, 1

</llo_original>
